<compile_context>
chip_gen: v6e
topology: v6e:2x2x1
jax: 0.10.0
libtpu: 0.0.40
codegen_flags: <defaults>
</compile_context>

<pallas_src>
import functools

import jax
import jax.numpy as jnp
from jax.experimental import pallas as pl
from jax.experimental.pallas import tpu as pltpu

NUM_CLASSES = 25
_LANE = 128
_SUBLANE = 8
_VREG = _LANE * _SUBLANE  # 1024


def _round_up(x, m):
    return (x + m - 1) // m * m


def _baikal_kernel(out_ref, tgt_ref, part_ref, *, tile_b, batch):
    # out_ref:  (25, TILE_B) f32  probabilities; classes on sublanes, batch on lanes
    # tgt_ref:  (1, TILE_B)  i32  class index per column
    # part_ref: (1, 8, 128)  f32  per-tile partial sums (reduced outside the kernel)
    out = out_ref[...]
    tgt = tgt_ref[...]

    # sum_c -log(p_c) per column: EUP log + one sublane (XLU) reduce.
    neg_log_sum = jnp.sum(-jnp.log(out), axis=0, keepdims=True)        # (1, TILE_B)

    # Gather p_target per column via one-hot select, then ONE divide per row
    # (instead of 25 divides per row in the naive onehot/output formulation).
    cls = jax.lax.broadcasted_iota(jnp.int32, out.shape, 0)            # class idx
    onehot = cls == tgt                                                # (25, TILE_B)
    p_tgt = jnp.sum(jnp.where(onehot, out, 0.0), axis=0, keepdims=True)

    per_col = neg_log_sum + 1.0 / p_tgt                                # (1, TILE_B)

    # Mask padded batch columns (the mean over the TOTAL batch is done outside).
    col = pl.program_id(0) * tile_b + jax.lax.broadcasted_iota(
        jnp.int32, (1, tile_b), 1)
    per_col = jnp.where(col < batch, per_col, 0.0)

    # Fold TILE_B lanes into one aligned (8, 128) partial block.  Only the
    # total sum matters, so the element ordering of the fold is irrelevant.
    n_rows = tile_b // _LANE
    r = per_col.reshape(n_rows, _LANE)                                 # (n_rows, 128)
    partial = r[0:_SUBLANE, :]
    for k in range(1, n_rows // _SUBLANE):                             # <= 8 static adds
        partial = partial + r[k * _SUBLANE:(k + 1) * _SUBLANE, :]
    part_ref[0] = partial


def baikal_loss(output: jax.Array, target: jax.Array, *, tile_b: int = 8192):
    """output: (B, 25) strictly-positive probabilities; target: (B,) int class ids."""
    b, c = output.shape
    assert c == NUM_CLASSES

    # Lane-dense layout: batch on lanes, classes on sublanes.
    out_t = output.astype(jnp.float32).T                   # (25, B)
    tgt = target.astype(jnp.int32).reshape(1, b)           # (1, B)

    # Tile / pad the batch axis (multiples of 1024 so each tile folds to (8,128)).
    tile_b = min(tile_b, _round_up(b, _VREG))
    padded_b = _round_up(b, tile_b)
    if padded_b != b:
        # Pad probabilities with 1.0 (log 1 = 0, 1/1 finite) and targets with
        # class 0; padded columns are additionally zero-masked in the kernel.
        out_t = jnp.pad(out_t, ((0, 0), (0, padded_b - b)), constant_values=1.0)
        tgt = jnp.pad(tgt, ((0, 0), (0, padded_b - b)), constant_values=0)
    num_tiles = padded_b // tile_b

    partials = pl.pallas_call(
        functools.partial(_baikal_kernel, tile_b=tile_b, batch=b),
        out_shape=jax.ShapeDtypeStruct((num_tiles, _SUBLANE, _LANE), jnp.float32),
        grid=(num_tiles,),
        in_specs=[
            pl.BlockSpec((NUM_CLASSES, tile_b), lambda i: (0, i)),
            pl.BlockSpec((1, tile_b), lambda i: (0, i)),
        ],
        out_specs=pl.BlockSpec((1, _SUBLANE, _LANE), lambda i: (i, 0, 0)),
        compiler_params=pltpu.CompilerParams(
            dimension_semantics=("parallel",)),
    )(out_t, tgt)

    # Tiny final reduction + mean over the TOTAL batch size (not the tile size).
    return jnp.sum(partials) / jnp.float32(b)


def _reference(output, target):
    onehot = jax.nn.one_hot(target, NUM_CLASSES, dtype=jnp.float32)
    return jnp.mean(jnp.sum(-(jnp.log(output) - onehot / output), axis=-1))


if __name__ == "__main__":
    key = jax.random.PRNGKey(0)
    k_out, k_tgt, k_out2, k_tgt2 = jax.random.split(key, 4)

    # Primary small example: B=8 rows of 25-class probabilities.
    B = 8
    output = jax.nn.softmax(
        jax.random.normal(k_out, (B, NUM_CLASSES), dtype=jnp.float32), axis=-1)
    target = jax.random.randint(k_tgt, (B,), 0, NUM_CLASSES, dtype=jnp.int32)

    loss = baikal_loss(output, target)
    jax.block_until_ready(loss)
    ref = _reference(output, target)
    assert jnp.allclose(loss, ref, rtol=1e-5, atol=1e-5), (loss, ref)

    # Secondary check: batch not a multiple of the tile (exercises padding + mask).
    B2 = 300
    output2 = jax.nn.softmax(
        jax.random.normal(k_out2, (B2, NUM_CLASSES), dtype=jnp.float32), axis=-1)
    target2 = jax.random.randint(k_tgt2, (B2,), 0, NUM_CLASSES, dtype=jnp.int32)
    loss2 = baikal_loss(output2, target2)
    jax.block_until_ready(loss2)
    ref2 = _reference(output2, target2)
    assert jnp.allclose(loss2, ref2, rtol=1e-5, atol=1e-5), (loss2, ref2)

    print("KERNEL_OK")
</pallas_src>

<mosaic_0001>
module attributes {stable_mosaic.version = 11 : i64} {
  func.func @_baikal_kernel(%arg0: i32, %arg1: memref<25x1024xf32, #tpu.memory_space<vmem>>, %arg2: memref<1x1024xi32, #tpu.memory_space<vmem>>, %arg3: memref<1x8x128xf32, #tpu.memory_space<vmem>>) attributes {dimension_semantics = [#tpu.dimension_semantics<parallel>], iteration_bounds = array<i64: 1>, scalar_prefetch = 0 : i64, scratch_operands = 0 : i64, tpu.core_type = #tpu.core_type<tc>, window_params = [{transform_indices = @transform_0, window_bounds = array<i64: 25, 1024>}, {transform_indices = @transform_1, window_bounds = array<i64: 1, 1024>}, {transform_indices = @transform_2, window_bounds = array<i64: 1, 8, 128>}]} {
    %c0 = arith.constant 0 : index
    %c0_0 = arith.constant 0 : index
    %0 = vector.load %arg1[%c0, %c0_0] : memref<25x1024xf32, #tpu.memory_space<vmem>>, vector<25x1024xf32>
    %c0_1 = arith.constant 0 : index
    %c0_2 = arith.constant 0 : index
    %1 = vector.load %arg2[%c0_1, %c0_2] : memref<1x1024xi32, #tpu.memory_space<vmem>>, vector<1x1024xi32>
    %2 = math.log %0 : vector<25x1024xf32>
    %cst = arith.constant 0.000000e+00 : f32
    %3 = vector.broadcast %cst : f32 to vector<25x1024xf32>
    %4 = arith.subf %3, %2 : vector<25x1024xf32>
    %cst_3 = arith.constant dense<0.000000e+00> : vector<1024xf32>
    %5 = vector.multi_reduction <add>, %4, %cst_3 [0] : vector<25x1024xf32> to vector<1024xf32>
    %6 = vector.shape_cast %5 : vector<1024xf32> to vector<1x1024xf32>
    %7 = tpu.iota {dimensions = array<i32: 0>} : vector<25x1024xi32>
    %8 = vector.broadcast %1 : vector<1x1024xi32> to vector<25x1024xi32>
    %9 = arith.cmpi eq, %7, %8 : vector<25x1024xi32>
    %cst_4 = arith.constant 0.000000e+00 : f32
    %10 = vector.broadcast %cst_4 : f32 to vector<25x1024xf32>
    %11 = arith.select %9, %0, %10 : vector<25x1024xi1>, vector<25x1024xf32>
    %cst_5 = arith.constant dense<0.000000e+00> : vector<1024xf32>
    %12 = vector.multi_reduction <add>, %11, %cst_5 [0] : vector<25x1024xf32> to vector<1024xf32>
    %13 = vector.shape_cast %12 : vector<1024xf32> to vector<1x1024xf32>
    %cst_6 = arith.constant 1.000000e+00 : f32
    %14 = vector.broadcast %cst_6 : f32 to vector<1x1024xf32>
    %15 = arith.divf %14, %13 : vector<1x1024xf32>
    %16 = arith.addf %6, %15 : vector<1x1024xf32>
    %c1024_i32 = arith.constant 1024 : i32
    %17 = arith.muli %arg0, %c1024_i32 : i32
    %18 = tpu.iota {dimensions = array<i32: 1>} : vector<1x1024xi32>
    %19 = vector.broadcast %17 : i32 to vector<1x1024xi32>
    %20 = arith.addi %19, %18 : vector<1x1024xi32>
    %c8_i32 = arith.constant 8 : i32
    %21 = vector.broadcast %c8_i32 : i32 to vector<1x1024xi32>
    %22 = arith.cmpi slt, %20, %21 : vector<1x1024xi32>
    %cst_7 = arith.constant 0.000000e+00 : f32
    %23 = vector.broadcast %cst_7 : f32 to vector<1x1024xf32>
    %24 = arith.select %22, %16, %23 : vector<1x1024xi1>, vector<1x1024xf32>
    %25 = vector.shape_cast %24 : vector<1x1024xf32> to vector<8x128xf32>
    %c0_8 = arith.constant 0 : index
    %c0_9 = arith.constant 0 : index
    %c0_10 = arith.constant 0 : index
    %26 = vector.load %arg3[%c0_8, %c0_9, %c0_10] : memref<1x8x128xf32, #tpu.memory_space<vmem>>, vector<1x8x128xf32>
    %27 = vector.shape_cast %26 : vector<1x8x128xf32> to vector<8x128xf32>
    %28 = vector.shape_cast %25 : vector<8x128xf32> to vector<1x8x128xf32>
    tpu.vector_store %arg3[%c0_8, %c0_9, %c0_10], %28 {strides = array<i32>} : memref<1x8x128xf32, #tpu.memory_space<vmem>>, vector<1x8x128xf32>,
    return
  }
  func.func @transform_0(%arg0: i32) -> (i32, i32) {
    %c0_i32 = arith.constant 0 : i32
    %c0_i32_0 = arith.constant 0 : i32
    return %c0_i32, %arg0 : i32, i32
  }
  func.func @transform_1(%arg0: i32) -> (i32, i32) {
    %c0_i32 = arith.constant 0 : i32
    %c0_i32_0 = arith.constant 0 : i32
    return %c0_i32, %arg0 : i32, i32
  }
  func.func @transform_2(%arg0: i32) -> (i32, i32, i32) {
    %c0_i32 = arith.constant 0 : i32
    %c0_i32_0 = arith.constant 0 : i32
    %c0_i32_1 = arith.constant 0 : i32
    return %arg0, %c0_i32, %c0_i32_0 : i32, i32, i32
  }
}

</mosaic_0001>

<llo_original>
// kernel: tpu_custom_call.1
$region0: #{tpu_custom_call.1}
  #allocation0 [shape = 'u32[]', space=smem, size = 0x4, offset = 0x4, fixed_abs, tag = 'smem constant byte address 0x4 - core index']
  #allocation1 [shape = 'u32[144,128]{1,0:T(1,128)}', space=vmem, size = 0x12000, scoped, tag = 'internal scratch']
  %s0 = inlined_call_operand.hbm [shape: f32[25,1024], index: 0, kind: input, shape index: {}]
  %s1 = inlined_call_operand.hbm [shape: s32[1,1024], index: 1, kind: input, shape index: {}]
  %s2 = inlined_call_operand.hbm [shape: f32[1,8,128], index: 2, kind: output, shape index: {}]
  %s3 = sld [smem:[#allocation0]]
  $region26: #{tpu_custom_call.1} parent=0
    _
  %s5 = ssub.s32 1, %s3
  %s6 = scalar_select 0, %s5, %s3
  $region1: #{tpu_custom_call.1} parent=0
    #allocation2 [shape = 'u8[131072]{0}', space=vmem, size = 0x20000, scoped, tag = 'input window, operand 0, single buffered']
    #allocation3 [shape = 's32[1]{0}', space=sflag, size = 0x4, scoped, tag = 'scoped memory for tpu_custom_call.1']
    #allocation4 [shape = 's32[1]{0}', space=sflag, size = 0x4, scoped, tag = 'scoped memory for tpu_custom_call.1']
    #allocation5 [shape = 'u8[4096]{0}', space=vmem, size = 0x1000, scoped, tag = 'input window, operand 1, single buffered']
    #allocation6 [shape = 's32[1]{0}', space=sflag, size = 0x4, scoped, tag = 'scoped memory for tpu_custom_call.1']
    #allocation7 [shape = 'u8[4096]{0}', space=vmem, size = 0x1000, scoped, tag = 'output window, operand 0, single buffered']
    %7 = vsyncpa [#allocation3], 0
    %8 = vsyncpa [#allocation6], 0
    %9 = vsyncpa [#allocation4], 0
    // Predicated region
    $region2: #{tpu_custom_call.1} parent=1 // pred_check
      _
    $region3: #{tpu_custom_call.1} parent=1 // pred_check_branch
      %11 = sbr.rel (0) target = $region5
    $region4: #{tpu_custom_call.1} parent=1 // pred_region
      %s13 = ssub.s32 4096, 4096
      %14 = vsyncadd [#allocation3], %s13
      %s15 = sshll.u32 [#allocation2], 4
      %s16 = int_to_ptr.vmem [resolvable:$true] %s15
      %21 = dma.hbm_to_vmem [thread:$0]  %s0, 4096, %s16, [#allocation3], 1024, 1024, 64
    $region5: #{tpu_custom_call.1} parent=1 // pred_fallthru
      _
    // Predicated region
    $region6: #{tpu_custom_call.1} parent=1 // pred_check
      _
    $region7: #{tpu_custom_call.1} parent=1 // pred_check_branch
      %23 = sbr.rel (0) target = $region9
    $region8: #{tpu_custom_call.1} parent=1 // pred_region
      %s25 = ssub.s32 128, 128
      %26 = vsyncadd [#allocation6], %s25
      %s28 = sshll.u32 [#allocation5], 4
      %s29 = int_to_ptr.vmem [resolvable:$true] %s28
      %31 = dma.hbm_to_vmem [thread:$0]  %s1, 128, %s29, [#allocation6]
    $region9: #{tpu_custom_call.1} parent=1 // pred_fallthru
      _
    // Predicated region
    $region10: #{tpu_custom_call.1} parent=1 // pred_check
      _
    $region11: #{tpu_custom_call.1} parent=1 // pred_check_branch
      %33 = sbr.rel (0) target = $region13
    $region12: #{tpu_custom_call.1} parent=1 // pred_region
      %34 = dma.done [#allocation3], 4096
    $region13: #{tpu_custom_call.1} parent=1 // pred_fallthru
      _
    // Predicated region
    $region14: #{tpu_custom_call.1} parent=1 // pred_check
      _
    $region15: #{tpu_custom_call.1} parent=1 // pred_check_branch
      %36 = sbr.rel (0) target = $region17
    $region16: #{tpu_custom_call.1} parent=1 // pred_region
      %37 = dma.done [#allocation6], 128
    $region17: #{tpu_custom_call.1} parent=1 // pred_fallthru
      _
    %v38 = vld [vmem:[#allocation2] sm:$0xff]
    %v39 = vld [vmem:[#allocation2 + $0x8] sm:$0xff]
    %v40 = vld [vmem:[#allocation2 + $0x10] sm:$0xff]
    %v41 = vld [vmem:[#allocation2 + $0x18] sm:$0xff]
    %v42 = vld [vmem:[#allocation2 + $0x20] sm:$0xff]
    %v43 = vld [vmem:[#allocation2 + $0x28] sm:$0xff]
    %v44 = vld [vmem:[#allocation2 + $0x30] sm:$0xff]
    %v45 = vld [vmem:[#allocation2 + $0x38] sm:$0xff]
    %v46 = vld [vmem:[#allocation2 + $0x40] sm:$0xff]
    %v47 = vld [vmem:[#allocation2 + $0x48] sm:$0xff]
    %v48 = vld [vmem:[#allocation2 + $0x50] sm:$0xff]
    %v49 = vld [vmem:[#allocation2 + $0x58] sm:$0xff]
    %v50 = vld [vmem:[#allocation2 + $0x60] sm:$0xff]
    %v51 = vld [vmem:[#allocation2 + $0x68] sm:$0xff]
    %v52 = vld [vmem:[#allocation2 + $0x70] sm:$0xff]
    %v53 = vld [vmem:[#allocation2 + $0x78] sm:$0xff]
    %v54 = vld [vmem:[#allocation2 + $0x80] sm:$0xff]
    %v55 = vld [vmem:[#allocation2 + $0x88] sm:$0xff]
    %v56 = vld [vmem:[#allocation2 + $0x90] sm:$0xff]
    %v57 = vld [vmem:[#allocation2 + $0x98] sm:$0xff]
    %v58 = vld [vmem:[#allocation2 + $0xa0] sm:$0xff]
    %v59 = vld [vmem:[#allocation2 + $0xa8] sm:$0xff]
    %v60 = vld [vmem:[#allocation2 + $0xb0] sm:$0xff]
    %v61 = vld [vmem:[#allocation2 + $0xb8] sm:$0xff]
    %v62 = vld [vmem:[#allocation2 + $0xc0] sm:$0x1]
    %v63 = vld [vmem:[#allocation2 + $0xc8] sm:$0x1]
    %v64 = vld [vmem:[#allocation2 + $0xd0] sm:$0x1]
    %v65 = vld [vmem:[#allocation2 + $0xd8] sm:$0x1]
    %v66 = vld [vmem:[#allocation2 + $0xe0] sm:$0x1]
    %v67 = vld [vmem:[#allocation2 + $0xe8] sm:$0x1]
    %v68 = vld [vmem:[#allocation2 + $0xf0] sm:$0x1]
    %v69 = vld [vmem:[#allocation2 + $0xf8] sm:$0x1]
    %v70 = vld [vmem:[#allocation5] sm:$0xff]
    %v71 = vlog2.pop %v38
    %v72 = vmul.f32 %v71, 0.6931472
    %v73 = vlog2.pop %v39
    %v74 = vmul.f32 %v73, 0.6931472
    %v75 = vlog2.pop %v40
    %v76 = vmul.f32 %v75, 0.6931472
    %v77 = vlog2.pop %v41
    %v78 = vmul.f32 %v77, 0.6931472
    %v79 = vlog2.pop %v42
    %v80 = vmul.f32 %v79, 0.6931472
    %v81 = vlog2.pop %v43
    %v82 = vmul.f32 %v81, 0.6931472
    %v83 = vlog2.pop %v44
    %v84 = vmul.f32 %v83, 0.6931472
    %v85 = vlog2.pop %v45
    %v86 = vmul.f32 %v85, 0.6931472
    %v87 = vlog2.pop %v46
    %v88 = vmul.f32 %v87, 0.6931472
    %v89 = vlog2.pop %v47
    %v90 = vmul.f32 %v89, 0.6931472
    %v91 = vlog2.pop %v48
    %v92 = vmul.f32 %v91, 0.6931472
    %v93 = vlog2.pop %v49
    %v94 = vmul.f32 %v93, 0.6931472
    %v95 = vlog2.pop %v50
    %v96 = vmul.f32 %v95, 0.6931472
    %v97 = vlog2.pop %v51
    %v98 = vmul.f32 %v97, 0.6931472
    %v99 = vlog2.pop %v52
    %v100 = vmul.f32 %v99, 0.6931472
    %v101 = vlog2.pop %v53
    %v102 = vmul.f32 %v101, 0.6931472
    %v103 = vlog2.pop %v54
    %v104 = vmul.f32 %v103, 0.6931472
    %v105 = vlog2.pop %v55
    %v106 = vmul.f32 %v105, 0.6931472
    %v107 = vlog2.pop %v56
    %v108 = vmul.f32 %v107, 0.6931472
    %v109 = vlog2.pop %v57
    %v110 = vmul.f32 %v109, 0.6931472
    %v111 = vlog2.pop %v58
    %v112 = vmul.f32 %v111, 0.6931472
    %v113 = vlog2.pop %v59
    %v114 = vmul.f32 %v113, 0.6931472
    %v115 = vlog2.pop %v60
    %v116 = vmul.f32 %v115, 0.6931472
    %v117 = vlog2.pop %v61
    %v118 = vmul.f32 %v117, 0.6931472
    %v119 = vlog2.pop %v62
    %v120 = vmul.f32 %v119, 0.6931472
    %v121 = vlog2.pop %v63
    %v122 = vmul.f32 %v121, 0.6931472
    %v123 = vlog2.pop %v64
    %v124 = vmul.f32 %v123, 0.6931472
    %v125 = vlog2.pop %v65
    %v126 = vmul.f32 %v125, 0.6931472
    %v127 = vlog2.pop %v66
    %v128 = vmul.f32 %v127, 0.6931472
    %v129 = vlog2.pop %v67
    %v130 = vmul.f32 %v129, 0.6931472
    %v131 = vlog2.pop %v68
    %v132 = vmul.f32 %v131, 0.6931472
    %v133 = vlog2.pop %v69
    %v134 = vmul.f32 %v133, 0.6931472
    %v135 = vsub.f32 0.0, %v72
    %v136 = vsub.f32 0.0, %v74
    %v137 = vsub.f32 0.0, %v76
    %v138 = vsub.f32 0.0, %v78
    %v139 = vsub.f32 0.0, %v80
    %v140 = vsub.f32 0.0, %v82
    %v141 = vsub.f32 0.0, %v84
    %v142 = vsub.f32 0.0, %v86
    %v143 = vsub.f32 0.0, %v88
    %v144 = vsub.f32 0.0, %v90
    %v145 = vsub.f32 0.0, %v92
    %v146 = vsub.f32 0.0, %v94
    %v147 = vsub.f32 0.0, %v96
    %v148 = vsub.f32 0.0, %v98
    %v149 = vsub.f32 0.0, %v100
    %v150 = vsub.f32 0.0, %v102
    %v151 = vsub.f32 0.0, %v104
    %v152 = vsub.f32 0.0, %v106
    %v153 = vsub.f32 0.0, %v108
    %v154 = vsub.f32 0.0, %v110
    %v155 = vsub.f32 0.0, %v112
    %v156 = vsub.f32 0.0, %v114
    %v157 = vsub.f32 0.0, %v116
    %v158 = vsub.f32 0.0, %v118
    %v159 = vsub.f32 0.0, %v120
    %v160 = vsub.f32 0.0, %v122
    %v161 = vsub.f32 0.0, %v124
    %v162 = vsub.f32 0.0, %v126
    %v163 = vsub.f32 0.0, %v128
    %v164 = vsub.f32 0.0, %v130
    %v165 = vsub.f32 0.0, %v132
    %v166 = vsub.f32 0.0, %v134
    %v167 = vadd.f32 %v135, %v143
    %v168 = vadd.f32 %v167, %v151
    %vm169 = vcmask 1040384
    %v170 = vsel %vm169, %v159, 0.0
    %v171 = vadd.f32 %v168, %v170
    %v172 = vrot.slane %v171, 4
    %v173 = vadd.f32 %v171, %v172
    %v174 = vrot.slane %v173, 2
    %v175 = vadd.f32 %v173, %v174
    %v176 = vrot.slane %v175, 1
    %v177 = vadd.f32 %v175, %v176
    %v178 = vadd.f32 %v136, %v144
    %v179 = vadd.f32 %v178, %v152
    %v180 = vsel %vm169, %v160, 0.0
    %v181 = vadd.f32 %v179, %v180
    %v182 = vrot.slane %v181, 4
    %v183 = vadd.f32 %v181, %v182
    %v184 = vrot.slane %v183, 2
    %v185 = vadd.f32 %v183, %v184
    %v186 = vrot.slane %v185, 1
    %v187 = vadd.f32 %v185, %v186
    %v188 = vadd.f32 %v137, %v145
    %v189 = vadd.f32 %v188, %v153
    %v190 = vsel %vm169, %v161, 0.0
    %v191 = vadd.f32 %v189, %v190
    %v192 = vrot.slane %v191, 4
    %v193 = vadd.f32 %v191, %v192
    %v194 = vrot.slane %v193, 2
    %v195 = vadd.f32 %v193, %v194
    %v196 = vrot.slane %v195, 1
    %v197 = vadd.f32 %v195, %v196
    %v198 = vadd.f32 %v138, %v146
    %v199 = vadd.f32 %v198, %v154
    %v200 = vsel %vm169, %v162, 0.0
    %v201 = vadd.f32 %v199, %v200
    %v202 = vrot.slane %v201, 4
    %v203 = vadd.f32 %v201, %v202
    %v204 = vrot.slane %v203, 2
    %v205 = vadd.f32 %v203, %v204
    %v206 = vrot.slane %v205, 1
    %v207 = vadd.f32 %v205, %v206
    %v208 = vadd.f32 %v139, %v147
    %v209 = vadd.f32 %v208, %v155
    %v210 = vsel %vm169, %v163, 0.0
    %v211 = vadd.f32 %v209, %v210
    %v212 = vrot.slane %v211, 4
    %v213 = vadd.f32 %v211, %v212
    %v214 = vrot.slane %v213, 2
    %v215 = vadd.f32 %v213, %v214
    %v216 = vrot.slane %v215, 1
    %v217 = vadd.f32 %v215, %v216
    %v218 = vadd.f32 %v140, %v148
    %v219 = vadd.f32 %v218, %v156
    %v220 = vsel %vm169, %v164, 0.0
    %v221 = vadd.f32 %v219, %v220
    %v222 = vrot.slane %v221, 4
    %v223 = vadd.f32 %v221, %v222
    %v224 = vrot.slane %v223, 2
    %v225 = vadd.f32 %v223, %v224
    %v226 = vrot.slane %v225, 1
    %v227 = vadd.f32 %v225, %v226
    %v228 = vadd.f32 %v141, %v149
    %v229 = vadd.f32 %v228, %v157
    %v230 = vsel %vm169, %v165, 0.0
    %v231 = vadd.f32 %v229, %v230
    %v232 = vrot.slane %v231, 4
    %v233 = vadd.f32 %v231, %v232
    %v234 = vrot.slane %v233, 2
    %v235 = vadd.f32 %v233, %v234
    %v236 = vrot.slane %v235, 1
    %v237 = vadd.f32 %v235, %v236
    %v238 = vadd.f32 %v142, %v150
    %v239 = vadd.f32 %v238, %v158
    %v240 = vsel %vm169, %v166, 0.0
    %v241 = vadd.f32 %v239, %v240
    %v242 = vrot.slane %v241, 4
    %v243 = vadd.f32 %v241, %v242
    %v244 = vrot.slane %v243, 2
    %v245 = vadd.f32 %v243, %v244
    %v246 = vrot.slane %v245, 1
    %v247 = vadd.f32 %v245, %v246
    %v248 = vlaneseq
    %v249 = vshrl.u32 %v248, 7
    %v250 = vadd.s32 %v249, 8
    %v251 = vadd.s32 %v249, 16
    %v252 = vadd.s32 %v249, 24
    %v253 = vlaneseq
    %v254 = vshrl.u32 %v253, 7
    %v255 = vsub.s32 0, %v254
    %v256 = vrot.slane %v70, %v255
    %v257 = vlaneseq
    %v258 = vshrl.u32 %v257, 7
    %v259 = vsub.s32 1, %v258
    %v260 = vrot.slane %v70, %v259
    %v261 = vlaneseq
    %v262 = vshrl.u32 %v261, 7
    %v263 = vsub.s32 2, %v262
    %v264 = vrot.slane %v70, %v263
    %v265 = vlaneseq
    %v266 = vshrl.u32 %v265, 7
    %v267 = vsub.s32 3, %v266
    %v268 = vrot.slane %v70, %v267
    %v269 = vlaneseq
    %v270 = vshrl.u32 %v269, 7
    %v271 = vsub.s32 4, %v270
    %v272 = vrot.slane %v70, %v271
    %v273 = vlaneseq
    %v274 = vshrl.u32 %v273, 7
    %v275 = vsub.s32 5, %v274
    %v276 = vrot.slane %v70, %v275
    %v277 = vlaneseq
    %v278 = vshrl.u32 %v277, 7
    %v279 = vsub.s32 6, %v278
    %v280 = vrot.slane %v70, %v279
    %v281 = vlaneseq
    %v282 = vshrl.u32 %v281, 7
    %v283 = vsub.s32 7, %v282
    %v284 = vrot.slane %v70, %v283
    %vm285 = vcmp.eq.s32.totalorder %v249, %v256
    %vm286 = vcmp.eq.s32.totalorder %v249, %v260
    %vm287 = vcmp.eq.s32.totalorder %v249, %v264
    %vm288 = vcmp.eq.s32.totalorder %v249, %v268
    %vm289 = vcmp.eq.s32.totalorder %v249, %v272
    %vm290 = vcmp.eq.s32.totalorder %v249, %v276
    %vm291 = vcmp.eq.s32.totalorder %v249, %v280
    %vm292 = vcmp.eq.s32.totalorder %v249, %v284
    %vm293 = vcmp.eq.s32.totalorder %v250, %v256
    %vm294 = vcmp.eq.s32.totalorder %v250, %v260
    %vm295 = vcmp.eq.s32.totalorder %v250, %v264
    %vm296 = vcmp.eq.s32.totalorder %v250, %v268
    %vm297 = vcmp.eq.s32.totalorder %v250, %v272
    %vm298 = vcmp.eq.s32.totalorder %v250, %v276
    %vm299 = vcmp.eq.s32.totalorder %v250, %v280
    %vm300 = vcmp.eq.s32.totalorder %v250, %v284
    %vm301 = vcmp.eq.s32.totalorder %v251, %v256
    %vm302 = vcmp.eq.s32.totalorder %v251, %v260
    %vm303 = vcmp.eq.s32.totalorder %v251, %v264
    %vm304 = vcmp.eq.s32.totalorder %v251, %v268
    %vm305 = vcmp.eq.s32.totalorder %v251, %v272
    %vm306 = vcmp.eq.s32.totalorder %v251, %v276
    %vm307 = vcmp.eq.s32.totalorder %v251, %v280
    %vm308 = vcmp.eq.s32.totalorder %v251, %v284
    %vm309 = vcmp.eq.s32.totalorder %v252, %v256
    %vm310 = vcmp.eq.s32.totalorder %v252, %v260
    %vm311 = vcmp.eq.s32.totalorder %v252, %v264
    %vm312 = vcmp.eq.s32.totalorder %v252, %v268
    %vm313 = vcmp.eq.s32.totalorder %v252, %v272
    %vm314 = vcmp.eq.s32.totalorder %v252, %v276
    %vm315 = vcmp.eq.s32.totalorder %v252, %v280
    %vm316 = vcmp.eq.s32.totalorder %v252, %v284
    %v317 = vsel %vm285, %v38, 0.0
    %v318 = vsel %vm286, %v39, 0.0
    %v319 = vsel %vm287, %v40, 0.0
    %v320 = vsel %vm288, %v41, 0.0
    %v321 = vsel %vm289, %v42, 0.0
    %v322 = vsel %vm290, %v43, 0.0
    %v323 = vsel %vm291, %v44, 0.0
    %v324 = vsel %vm292, %v45, 0.0
    %v325 = vsel %vm293, %v46, 0.0
    %v326 = vsel %vm294, %v47, 0.0
    %v327 = vsel %vm295, %v48, 0.0
    %v328 = vsel %vm296, %v49, 0.0
    %v329 = vsel %vm297, %v50, 0.0
    %v330 = vsel %vm298, %v51, 0.0
    %v331 = vsel %vm299, %v52, 0.0
    %v332 = vsel %vm300, %v53, 0.0
    %v333 = vsel %vm301, %v54, 0.0
    %v334 = vsel %vm302, %v55, 0.0
    %v335 = vsel %vm303, %v56, 0.0
    %v336 = vsel %vm304, %v57, 0.0
    %v337 = vsel %vm305, %v58, 0.0
    %v338 = vsel %vm306, %v59, 0.0
    %v339 = vsel %vm307, %v60, 0.0
    %v340 = vsel %vm308, %v61, 0.0
    %v341 = vsel %vm309, %v62, 0.0
    %v342 = vsel %vm310, %v63, 0.0
    %v343 = vsel %vm311, %v64, 0.0
    %v344 = vsel %vm312, %v65, 0.0
    %v345 = vsel %vm313, %v66, 0.0
    %v346 = vsel %vm314, %v67, 0.0
    %v347 = vsel %vm315, %v68, 0.0
    %v348 = vsel %vm316, %v69, 0.0
    %v349 = vadd.f32 %v317, %v325
    %v350 = vadd.f32 %v349, %v333
    %v351 = vsel %vm169, %v341, 0.0
    %v352 = vadd.f32 %v350, %v351
    %v353 = vrot.slane %v352, 4
    %v354 = vadd.f32 %v352, %v353
    %v355 = vrot.slane %v354, 2
    %v356 = vadd.f32 %v354, %v355
    %v357 = vrot.slane %v356, 1
    %v358 = vadd.f32 %v356, %v357
    %v359 = vadd.f32 %v318, %v326
    %v360 = vadd.f32 %v359, %v334
    %v361 = vsel %vm169, %v342, 0.0
    %v362 = vadd.f32 %v360, %v361
    %v363 = vrot.slane %v362, 4
    %v364 = vadd.f32 %v362, %v363
    %v365 = vrot.slane %v364, 2
    %v366 = vadd.f32 %v364, %v365
    %v367 = vrot.slane %v366, 1
    %v368 = vadd.f32 %v366, %v367
    %v369 = vadd.f32 %v319, %v327
    %v370 = vadd.f32 %v369, %v335
    %v371 = vsel %vm169, %v343, 0.0
    %v372 = vadd.f32 %v370, %v371
    %v373 = vrot.slane %v372, 4
    %v374 = vadd.f32 %v372, %v373
    %v375 = vrot.slane %v374, 2
    %v376 = vadd.f32 %v374, %v375
    %v377 = vrot.slane %v376, 1
    %v378 = vadd.f32 %v376, %v377
    %v379 = vadd.f32 %v320, %v328
    %v380 = vadd.f32 %v379, %v336
    %v381 = vsel %vm169, %v344, 0.0
    %v382 = vadd.f32 %v380, %v381
    %v383 = vrot.slane %v382, 4
    %v384 = vadd.f32 %v382, %v383
    %v385 = vrot.slane %v384, 2
    %v386 = vadd.f32 %v384, %v385
    %v387 = vrot.slane %v386, 1
    %v388 = vadd.f32 %v386, %v387
    %v389 = vadd.f32 %v321, %v329
    %v390 = vadd.f32 %v389, %v337
    %v391 = vsel %vm169, %v345, 0.0
    %v392 = vadd.f32 %v390, %v391
    %v393 = vrot.slane %v392, 4
    %v394 = vadd.f32 %v392, %v393
    %v395 = vrot.slane %v394, 2
    %v396 = vadd.f32 %v394, %v395
    %v397 = vrot.slane %v396, 1
    %v398 = vadd.f32 %v396, %v397
    %v399 = vadd.f32 %v322, %v330
    %v400 = vadd.f32 %v399, %v338
    %v401 = vsel %vm169, %v346, 0.0
    %v402 = vadd.f32 %v400, %v401
    %v403 = vrot.slane %v402, 4
    %v404 = vadd.f32 %v402, %v403
    %v405 = vrot.slane %v404, 2
    %v406 = vadd.f32 %v404, %v405
    %v407 = vrot.slane %v406, 1
    %v408 = vadd.f32 %v406, %v407
    %v409 = vadd.f32 %v323, %v331
    %v410 = vadd.f32 %v409, %v339
    %v411 = vsel %vm169, %v347, 0.0
    %v412 = vadd.f32 %v410, %v411
    %v413 = vrot.slane %v412, 4
    %v414 = vadd.f32 %v412, %v413
    %v415 = vrot.slane %v414, 2
    %v416 = vadd.f32 %v414, %v415
    %v417 = vrot.slane %v416, 1
    %v418 = vadd.f32 %v416, %v417
    %v419 = vadd.f32 %v324, %v332
    %v420 = vadd.f32 %v419, %v340
    %v421 = vsel %vm169, %v348, 0.0
    %v422 = vadd.f32 %v420, %v421
    %v423 = vrot.slane %v422, 4
    %v424 = vadd.f32 %v422, %v423
    %v425 = vrot.slane %v424, 2
    %v426 = vadd.f32 %v424, %v425
    %v427 = vrot.slane %v426, 1
    %v428 = vadd.f32 %v426, %v427
    %v429 = vrcp.pop %v358
    %v430 = vmul.f32 1.0, %v429
    %v431 = vrcp.pop %v368
    %v432 = vmul.f32 1.0, %v431
    %v433 = vrcp.pop %v378
    %v434 = vmul.f32 1.0, %v433
    %v435 = vrcp.pop %v388
    %v436 = vmul.f32 1.0, %v435
    %v437 = vrcp.pop %v398
    %v438 = vmul.f32 1.0, %v437
    %v439 = vrcp.pop %v408
    %v440 = vmul.f32 1.0, %v439
    %v441 = vrcp.pop %v418
    %v442 = vmul.f32 1.0, %v441
    %v443 = vrcp.pop %v428
    %v444 = vmul.f32 1.0, %v443
    %v445 = vadd.f32 %v177, %v430
    %v446 = vadd.f32 %v187, %v432
    %v447 = vadd.f32 %v197, %v434
    %v448 = vadd.f32 %v207, %v436
    %v449 = vadd.f32 %v217, %v438
    %v450 = vadd.f32 %v227, %v440
    %v451 = vadd.f32 %v237, %v442
    %v452 = vadd.f32 %v247, %v444
    %s453 = smul.u32 0, 1024
    %v454 = vlaneseq
    %v455 = vand.u32 %v454, 127
    %v456 = vadd.s32 %v455, 128
    %v457 = vadd.s32 %v455, 256
    %v458 = vadd.s32 %v455, 384
    %v459 = vadd.s32 %v455, 512
    %v460 = vadd.s32 %v455, 640
    %v461 = vadd.s32 %v455, 768
    %v462 = vadd.s32 %v455, 896
    %v463 = vstv %s453
    %v464 = vadd.s32 %v463, %v455
    %v465 = vadd.s32 %v463, %v456
    %v466 = vadd.s32 %v463, %v457
    %v467 = vadd.s32 %v463, %v458
    %v468 = vadd.s32 %v463, %v459
    %v469 = vadd.s32 %v463, %v460
    %v470 = vadd.s32 %v463, %v461
    %v471 = vadd.s32 %v463, %v462
    %vm472 = vcmp.lt.s32.totalorder %v464, 8
    %vm473 = vcmp.lt.s32.totalorder %v465, 8
    %vm474 = vcmp.lt.s32.totalorder %v466, 8
    %vm475 = vcmp.lt.s32.totalorder %v467, 8
    %vm476 = vcmp.lt.s32.totalorder %v468, 8
    %vm477 = vcmp.lt.s32.totalorder %v469, 8
    %vm478 = vcmp.lt.s32.totalorder %v470, 8
    %vm479 = vcmp.lt.s32.totalorder %v471, 8
    %v480 = vsel %vm472, %v445, 0.0
    %v481 = vsel %vm473, %v446, 0.0
    %v482 = vsel %vm474, %v447, 0.0
    %v483 = vsel %vm475, %v448, 0.0
    %v484 = vsel %vm476, %v449, 0.0
    %v485 = vsel %vm477, %v450, 0.0
    %v486 = vsel %vm478, %v451, 0.0
    %v487 = vsel %vm479, %v452, 0.0
    %489 = vst [vmem:[#allocation7] ss:$8 sm:$0x1] %v480
    %490 = vst [vmem:[#allocation7] ss:$8 sm:$0x0] %v480
    %s492 = scalar_lea.vmem [#allocation7], 1
    %493 = vst [vmem:[%s492] ss:$8 sm:$0x1] %v481
    %494 = vst [vmem:[%s492] ss:$8 sm:$0x0] %v481
    %s496 = scalar_lea.vmem [#allocation7], 2
    %497 = vst [vmem:[%s496] ss:$8 sm:$0x1] %v482
    %498 = vst [vmem:[%s496] ss:$8 sm:$0x0] %v482
    %s500 = scalar_lea.vmem [#allocation7], 3
    %501 = vst [vmem:[%s500] ss:$8 sm:$0x1] %v483
    %502 = vst [vmem:[%s500] ss:$8 sm:$0x0] %v483
    %s504 = scalar_lea.vmem [#allocation7], 4
    %505 = vst [vmem:[%s504] ss:$8 sm:$0x1] %v484
    %506 = vst [vmem:[%s504] ss:$8 sm:$0x0] %v484
    %s508 = scalar_lea.vmem [#allocation7], 5
    %509 = vst [vmem:[%s508] ss:$8 sm:$0x1] %v485
    %510 = vst [vmem:[%s508] ss:$8 sm:$0x0] %v485
    %s512 = scalar_lea.vmem [#allocation7], 6
    %513 = vst [vmem:[%s512] ss:$8 sm:$0x1] %v486
    %514 = vst [vmem:[%s512] ss:$8 sm:$0x0] %v486
    %s516 = scalar_lea.vmem [#allocation7], 7
    %517 = vst [vmem:[%s516] ss:$8 sm:$0x1] %v487
    %518 = vst [vmem:[%s516] ss:$8 sm:$0x0] %v487
    // Predicated region
    $region18: #{tpu_custom_call.1} parent=1 // pred_check
      _
    $region19: #{tpu_custom_call.1} parent=1 // pred_check_branch
      %520 = sbr.rel (0) target = $region21
    $region20: #{tpu_custom_call.1} parent=1 // pred_region
      %s522 = ssub.s32 128, 128
      %523 = vsyncadd [#allocation4], %s522
      %s525 = sshll.u32 [#allocation7], 4
      %s526 = int_to_ptr.vmem [resolvable:$true] %s525
      %528 = dma.vmem_to_hbm [thread:$0]  %s526, 128, %s2, [#allocation4]
    $region21: #{tpu_custom_call.1} parent=1 // pred_fallthru
      _
    // Predicated region
    $region22: #{tpu_custom_call.1} parent=1 // pred_check
      _
    $region23: #{tpu_custom_call.1} parent=1 // pred_check_branch
      %530 = sbr.rel (0) target = $region25
    $region24: #{tpu_custom_call.1} parent=1 // pred_region
      %531 = dma.done [#allocation4], 128
    $region25: #{tpu_custom_call.1} parent=1 // pred_fallthru
      _
    %532 = vsyncpa [#allocation3], 1
    %533 = vsyncpa [#allocation6], 1
    %534 = vsyncpa [#allocation4], 1

</llo_original>
